<compile_context>
chip_gen: v7x
topology: tpu7x:2x2x1
jax: 0.10.0
libtpu: 0.0.40
codegen_flags: <defaults>
</compile_context>

<pallas_src>
import functools

import jax
import jax.numpy as jnp
from jax.experimental import pallas as pl
from jax.experimental.pallas import tpu as pltpu


def _round_up(x: int, m: int) -> int:
    return ((x + m - 1) // m) * m


def _cdiv(a: int, b: int) -> int:
    return (a + b - 1) // b


def _pcd_kernel(logits_ref, target_ref, out_ref, *, n_total, tile_n, native_mask):
    i = pl.program_id(0)

    logits = logits_ref[...]                                   # (tile_n, C)
    tgt = target_ref[...]                                      # (tile_n, 1) i32

    # One-hot gather of logits[r, tgt[r]] via masked lane-reduce.
    col = jax.lax.broadcasted_iota(jnp.int32, logits.shape, 1)
    mask = col == tgt
    if native_mask:
        # Sub-32-bit float path: select + reduce in native dtype (exactly one
        # non-zero per row -> exact), cast only the narrow gathered column.
        gathered = jnp.sum(jnp.where(mask, logits, 0),
                           axis=1, keepdims=True).astype(jnp.float32)
    else:
        gathered = jnp.sum(jnp.where(mask, logits.astype(jnp.float32), 0.0),
                           axis=1, keepdims=True)              # (tile_n, 1)

    sq = (1.0 - gathered) ** 2

    # Mask padded rows of the final (ragged) tile so they contribute 0.
    # NOTE: out-of-range / negative targets (e.g. ignore_index=-1) match no
    # column and contribute (1-0)^2, whereas torch.gather would raise.
    row = jax.lax.broadcasted_iota(jnp.int32, sq.shape, 0)
    valid = row < (n_total - i * tile_n)
    psum = jnp.sum(jnp.where(valid, sq, 0.0))                  # scalar partial

    # Lane-dense per-block partial; lane 0 is read back outside the kernel.
    out_ref[...] = jnp.full((1, 128), psum, dtype=out_ref.dtype)


def pcd_loss(contrast_logits: jax.Array, contrast_target: jax.Array) -> jax.Array:
    """contrast_logits: [N, C] float (any float dtype); contrast_target: [N] int.

    Returns the scalar PCD loss = mean((1 - logits[i, target[i]])^2).
    """
    n, c = contrast_logits.shape
    dtype = jnp.dtype(contrast_logits.dtype)
    itemsize = dtype.itemsize

    # ---- generation-aware VMEM policy -----------------------------------
    try:
        vmem_cap = int(pltpu.get_tpu_info().vmem_capacity_bytes)
    except Exception:
        vmem_cap = 64 * 1024 * 1024          # conservative (v7x per-core)
    # v5e/v6e (128 MiB): 64 MiB scoped limit; v7x (64 MiB/core): 48 MiB.
    vmem_limit = min(vmem_cap * 3 // 4, 64 * 1024 * 1024)
    # Total double-buffered footprint budget (headroom for Mosaic scratch).
    budget = min(vmem_limit - 4 * 1024 * 1024, 32 * 1024 * 1024)

    # ---- bytes-based tile sizing -----------------------------------------
    c_pad = _round_up(c, 128)
    logits_row_bytes = c_pad * itemsize
    tgt_row_bytes = 128 * 4                  # (tile_n,1) i32 pads lane dim to 128
    per_row_db = 2 * (logits_row_bytes + tgt_row_bytes)   # double-buffered

    target_block_bytes = 4 * 1024 * 1024     # ~4 MiB logits block ≈ roofline
    rows_from_budget = budget // per_row_db
    rows_from_block = target_block_bytes // logits_row_bytes

    # Native sublane multiple: 8 (f32) / 16 (bf16,fp16) / 32 (int8,fp8).
    sublane = max(8, 32 // itemsize)

    max_rows = max(sublane, min(rows_from_budget, rows_from_block))
    tile_n = min(max_rows, _round_up(n, sublane))
    if n >= 4 * sublane:
        # Keep >= 4 grid steps so pipelining / megacore sharding have work.
        tile_n = min(tile_n, _round_up(_cdiv(n, 4), sublane))
    tile_n = max(sublane, (tile_n // sublane) * sublane)
    num_tiles = _cdiv(n, tile_n)

    # Target is tiny; cast/reshape is negligible.  Logits keep their native
    # dtype in HBM (no wrapper upcast -> halved traffic for bf16).
    target = contrast_target.astype(jnp.int32).reshape(n, 1)

    native_mask = jnp.issubdtype(dtype, jnp.floating) and itemsize < 4
    kernel = functools.partial(_pcd_kernel, n_total=n, tile_n=tile_n,
                               native_mask=native_mask)

    partials = pl.pallas_call(
        kernel,
        out_shape=jax.ShapeDtypeStruct((1, num_tiles * 128), jnp.float32),
        grid=(num_tiles,),
        in_specs=[
            pl.BlockSpec((tile_n, c), lambda i: (i, 0)),
            pl.BlockSpec((tile_n, 1), lambda i: (i, 0)),
        ],
        out_specs=pl.BlockSpec((1, 128), lambda i: (0, i)),
        compiler_params=pltpu.CompilerParams(
            dimension_semantics=("parallel",),
            vmem_limit_bytes=int(vmem_limit),
        ),
    )(contrast_logits, target)

    # Final reduction over the (tiny) per-block partials + single divide by N.
    partials = partials.reshape(num_tiles, 128)[:, 0]
    return jnp.sum(partials) / jnp.float32(n)


if __name__ == "__main__":
    key = jax.random.PRNGKey(0)
    k1, k2 = jax.random.split(key)

    # Small, deterministic shapes; N=70 exercises the ragged last tile.
    N, C = 70, 32
    contrast_logits = jax.random.normal(k1, (N, C), dtype=jnp.float32)
    contrast_target = jax.random.randint(k2, (N,), 0, C, dtype=jnp.int32)

    # f32 path
    loss = pcd_loss(contrast_logits, contrast_target)
    jax.block_until_ready(loss)
    ref_gather = jnp.take_along_axis(contrast_logits,
                                     contrast_target[:, None], axis=1)
    ref = jnp.mean((1.0 - ref_gather) ** 2)
    assert jnp.allclose(loss, ref, rtol=1e-6, atol=1e-6), (loss, ref)

    # bf16 path (native-dtype masked gather inside the kernel)
    logits_bf16 = contrast_logits.astype(jnp.bfloat16)
    loss_bf16 = pcd_loss(logits_bf16, contrast_target)
    jax.block_until_ready(loss_bf16)
    ref_gather_bf16 = jnp.take_along_axis(
        logits_bf16, contrast_target[:, None], axis=1).astype(jnp.float32)
    ref_bf16 = jnp.mean((1.0 - ref_gather_bf16) ** 2)
    assert jnp.allclose(loss_bf16, ref_bf16, rtol=1e-3, atol=1e-3), (
        loss_bf16, ref_bf16)

    print("KERNEL_OK")
</pallas_src>

<mosaic_0001>
module attributes {stable_mosaic.version = 11 : i64} {
  func.func @_pcd_kernel(%arg0: i32, %arg1: memref<24x32xf32, #tpu.memory_space<vmem>>, %arg2: memref<24x1xi32, #tpu.memory_space<vmem>>, %arg3: memref<1x128xf32, #tpu.memory_space<vmem>>) attributes {dimension_semantics = [#tpu.dimension_semantics<parallel>], iteration_bounds = array<i64: 3>, scalar_prefetch = 0 : i64, scratch_operands = 0 : i64, tpu.core_type = #tpu.core_type<tc>, window_params = [{transform_indices = @transform_0, window_bounds = array<i64: 24, 32>}, {transform_indices = @transform_1, window_bounds = array<i64: 24, 1>}, {transform_indices = @transform_2, window_bounds = array<i64: 1, 128>}]} {
    %c0 = arith.constant 0 : index
    %c0_0 = arith.constant 0 : index
    %0 = vector.load %arg1[%c0, %c0_0] : memref<24x32xf32, #tpu.memory_space<vmem>>, vector<24x32xf32>
    %c0_1 = arith.constant 0 : index
    %c0_2 = arith.constant 0 : index
    %1 = vector.load %arg2[%c0_1, %c0_2] : memref<24x1xi32, #tpu.memory_space<vmem>>, vector<24x1xi32>
    %2 = tpu.iota {dimensions = array<i32: 1>} : vector<24x32xi32>
    %3 = vector.broadcast %1 : vector<24x1xi32> to vector<24x32xi32>
    %4 = arith.cmpi eq, %2, %3 : vector<24x32xi32>
    %cst = arith.constant 0.000000e+00 : f32
    %5 = vector.broadcast %cst : f32 to vector<24x32xf32>
    %6 = arith.select %4, %0, %5 : vector<24x32xi1>, vector<24x32xf32>
    %cst_3 = arith.constant dense<0.000000e+00> : vector<24xf32>
    %7 = vector.multi_reduction <add>, %6, %cst_3 [1] : vector<24x32xf32> to vector<24xf32>
    %8 = vector.shape_cast %7 : vector<24xf32> to vector<24x1xf32>
    %cst_4 = arith.constant 1.000000e+00 : f32
    %9 = vector.broadcast %cst_4 : f32 to vector<24x1xf32>
    %10 = arith.subf %9, %8 : vector<24x1xf32>
    %11 = arith.mulf %10, %10 : vector<24x1xf32>
    %12 = tpu.iota {dimensions = array<i32: 0>} : vector<24x1xi32>
    %c24_i32 = arith.constant 24 : i32
    %13 = arith.muli %arg0, %c24_i32 : i32
    %c70_i32 = arith.constant 70 : i32
    %14 = arith.subi %c70_i32, %13 : i32
    %15 = vector.broadcast %14 : i32 to vector<24x1xi32>
    %16 = arith.cmpi slt, %12, %15 : vector<24x1xi32>
    %cst_5 = arith.constant 0.000000e+00 : f32
    %17 = vector.broadcast %cst_5 : f32 to vector<24x1xf32>
    %18 = arith.select %16, %11, %17 : vector<24x1xi1>, vector<24x1xf32>
    %19 = vector.shape_cast %18 : vector<24x1xf32> to vector<1x24x1xf32>
    %cst_6 = arith.constant dense<0.000000e+00> : vector<1xf32>
    %20 = vector.multi_reduction <add>, %19, %cst_6 [1, 2] : vector<1x24x1xf32> to vector<1xf32>
    %21 = vector.shape_cast %20 : vector<1xf32> to vector<1x1x1xf32>
    %22 = vector.extract %21[0, 0, 0] : f32 from vector<1x1x1xf32>
    %23 = vector.broadcast %22 : f32 to vector<1x128xf32>
    %c0_7 = arith.constant 0 : index
    %c0_8 = arith.constant 0 : index
    %24 = vector.load %arg3[%c0_7, %c0_8] : memref<1x128xf32, #tpu.memory_space<vmem>>, vector<1x128xf32>
    tpu.vector_store %arg3[%c0_7, %c0_8], %23 {strides = array<i32>} : memref<1x128xf32, #tpu.memory_space<vmem>>, vector<1x128xf32>,
    return
  }
  func.func @transform_0(%arg0: i32) -> (i32, i32) {
    %c0_i32 = arith.constant 0 : i32
    %c0_i32_0 = arith.constant 0 : i32
    return %arg0, %c0_i32 : i32, i32
  }
  func.func @transform_1(%arg0: i32) -> (i32, i32) {
    %c0_i32 = arith.constant 0 : i32
    %c0_i32_0 = arith.constant 0 : i32
    return %arg0, %c0_i32 : i32, i32
  }
  func.func @transform_2(%arg0: i32) -> (i32, i32) {
    %c0_i32 = arith.constant 0 : i32
    %c0_i32_0 = arith.constant 0 : i32
    return %c0_i32, %arg0 : i32, i32
  }
}

</mosaic_0001>

<llo_original>
// kernel: tpu_custom_call.1
$region0: #{tpu_custom_call.1}
  #allocation0 [shape = 'u32[]', space=smem, size = 0x4, offset = 0x4, fixed_abs, tag = 'smem constant byte address 0x4 - core index']
  #allocation1 [shape = 'u32[144,128]{1,0:T(1,128)}', space=vmem, size = 0x12000, scoped, tag = 'internal scratch']
  %s0 = inlined_call_operand.vmem [shape: f32[70,32], index: 0, kind: input, shape index: {}]
  %s1 = inlined_call_operand.vmem [shape: s32[70,1], index: 1, kind: input, shape index: {}]
  %s2 = inlined_call_operand.hbm [shape: f32[1,384], index: 2, kind: output, shape index: {}]
  %s3 = sld [smem:[#allocation0]]
  $region41: #{tpu_custom_call.1} parent=0
    _
  %s5 = ssub.s32 1, %s3
  %s6 = scalar_select 0, %s5, %s3
  $region1: #{tpu_custom_call.1} parent=0
    #allocation2 [shape = 'u8[1024]{0}', space=vmem, size = 0x400, scoped, tag = 'output window, operand 0']
    #allocation3 [shape = 's32[2]{0}', space=sflag, size = 0x8, scoped, tag = 'scoped memory for tpu_custom_call.1']
    %7 = vsyncpa [#allocation3], 0
    %s8 = scalar_lea.sflag [#allocation3], 1
    %9 = vsyncpa %s8, 0
    loop: start=0, step=1, limit=5
    $region2: #{tpu_custom_call.1} parent=1 // loop_pre_header
      _
    $region3: #{tpu_custom_call.1} parent=1 // loop_header
      %s11 = sphi 0, %s15
      %p12 = scmp.ge.s32.totalorder %s11, 5
      %s21 = sphi 0, %s23
      %s24 = sphi 0, %s21
      %s25 = sphi 0, %s24
      %s41 = sphi 0, %s25
      %s47 = sphi 0, %s49
      %s50 = sphi 0, %s47
      %s51 = sphi 0, %s50
      %s67 = sphi 0, %s51
      %s73 = sphi 0, %s75
      %s76 = sphi 0, %s73
      %s77 = sphi 0, %s76
      %s93 = sphi 0, %s77
    $region4: #{tpu_custom_call.1} parent=1 // loop_header_branch
      %14 = sbr.rel (%p12) target = $region8
    $region5: #{tpu_custom_call.1} parent=1 // loop_body
      %s16 = ssub.s32 %s11, 1
      %s17 = ssub.s32 %s11, 2
      %s18 = sadd.s32 %s11, 1
      %s19 = ssub.s32 %s11, %s18
      %p20 = scmp.eq.s32.totalorder %s19, 0
      %s22 = sadd.s32 %s21, 1
      %s23 = scalar_select %p20, %s21, %s22
      %p26 = pneg %p20
      %p27 = scmp.eq.s32.totalorder %s11, 2
      %p28 = por %p26, %p27
      %p29 = scmp.ne.s32.totalorder %s21, %s24
      %p30 = scmp.eq.s32.totalorder %s11, 0
      %p31 = por %p29, %p30
      %p32 = scmp.ne.s32.totalorder %s21, %s24
      %p33 = scmp.eq.s32.totalorder %s16, 2
      %p34 = por %p32, %p33
      %p35 = scmp.ne.s32.totalorder %s24, %s25
      %p36 = scmp.eq.s32.totalorder %s16, 0
      %p37 = por %p35, %p36
      %p38 = scmp.ne.s32.totalorder %s24, %s25
      %p39 = scmp.eq.s32.totalorder %s17, 2
      %p40 = por %p38, %p39
      %p42 = scmp.ne.s32.totalorder %s25, %s41
      %p43 = scmp.eq.s32.totalorder %s17, 0
      %p44 = por %p42, %p43
      %s45 = ssub.s32 %s11, %s18
      %p46 = scmp.eq.s32.totalorder %s45, 0
      %s48 = sadd.s32 %s47, 1
      %s49 = scalar_select %p46, %s47, %s48
      %p52 = pneg %p46
      %p53 = scmp.eq.s32.totalorder %s11, 2
      %p54 = por %p52, %p53
      %p55 = scmp.ne.s32.totalorder %s47, %s50
      %p56 = scmp.eq.s32.totalorder %s11, 0
      %p57 = por %p55, %p56
      %p58 = scmp.ne.s32.totalorder %s47, %s50
      %p59 = scmp.eq.s32.totalorder %s16, 2
      %p60 = por %p58, %p59
      %p61 = scmp.ne.s32.totalorder %s50, %s51
      %p62 = scmp.eq.s32.totalorder %s16, 0
      %p63 = por %p61, %p62
      %p64 = scmp.ne.s32.totalorder %s50, %s51
      %p65 = scmp.eq.s32.totalorder %s17, 2
      %p66 = por %p64, %p65
      %p68 = scmp.ne.s32.totalorder %s51, %s67
      %p69 = scmp.eq.s32.totalorder %s17, 0
      %p70 = por %p68, %p69
      %s71 = ssub.s32 %s11, %s18
      %p72 = scmp.eq.s32.totalorder %s71, 0
      %s74 = sadd.s32 %s73, 1
      %s75 = scalar_select %p72, %s73, %s74
      %p78 = pneg %p72
      %p79 = scmp.eq.s32.totalorder %s11, 2
      %p80 = por %p78, %p79
      %p81 = scmp.ne.s32.totalorder %s73, %s76
      %p82 = scmp.eq.s32.totalorder %s11, 0
      %p83 = por %p81, %p82
      %p84 = scmp.ne.s32.totalorder %s73, %s76
      %p85 = scmp.eq.s32.totalorder %s16, 2
      %p86 = por %p84, %p85
      %p87 = scmp.ne.s32.totalorder %s76, %s77
      %p88 = scmp.eq.s32.totalorder %s16, 0
      %p89 = por %p87, %p88
      %p90 = scmp.ne.s32.totalorder %s76, %s77
      %p91 = scmp.eq.s32.totalorder %s17, 2
      %p92 = por %p90, %p91
      %p94 = scmp.ne.s32.totalorder %s77, %s93
      %p95 = scmp.eq.s32.totalorder %s17, 0
      %p96 = por %p94, %p95
      %p97 = scmp.le.s32.totalorder 1, %s11
      %p98 = scmp.lt.s32.totalorder %s11, 4
      %p99 = pnand %p97, %p98
      %p100 = pneg %p99
      // Predicated region
      $region9: #{tpu_custom_call.1} parent=5 // pred_check
        _
      $region10: #{tpu_custom_call.1} parent=5 // pred_check_branch
        %102 = sbr.rel (%p99) target = $region12
      $region11: #{tpu_custom_call.1} parent=5 // pred_region
        %s103 = ssub.s32 %s11, 1
      $region12: #{tpu_custom_call.1} parent=5 // pred_fallthru
        _
      %p104 = scmp.lt.s32.totalorder %s11, 3
      // Predicated region
      $region13: #{tpu_custom_call.1} parent=5 // pred_check
        %p105 = pneg %p104
      $region14: #{tpu_custom_call.1} parent=5 // pred_check_branch
        %107 = sbr.rel (%p105) target = $region16
      $region15: #{tpu_custom_call.1} parent=5 // pred_region
        // Predicated region
        $region17: #{tpu_custom_call.1} parent=15 // pred_check
          %p108 = pneg %p31
        $region18: #{tpu_custom_call.1} parent=15 // pred_check_branch
          %110 = sbr.rel (%p108) target = $region20
        $region19: #{tpu_custom_call.1} parent=15 // pred_region
          %s111 = smul.u32 3, %s11
          %p112 = scmp.lt.s32.totalorder %s111, 8
          %s113 = scalar_select %p112, %s111, 8
          %s114 = smul.addr %s113, 8
          %s115 = scalar_lea.vmem %s0, %s114
          %s116 = smul.u32 3, %s11
        $region20: #{tpu_custom_call.1} parent=15 // pred_fallthru
          _
        // Predicated region
        $region21: #{tpu_custom_call.1} parent=15 // pred_check
          %p117 = pneg %p57
        $region22: #{tpu_custom_call.1} parent=15 // pred_check_branch
          %119 = sbr.rel (%p117) target = $region24
        $region23: #{tpu_custom_call.1} parent=15 // pred_region
          %s120 = smul.u32 3, %s11
          %p121 = scmp.lt.s32.totalorder %s120, 8
          %s122 = scalar_select %p121, %s120, 8
          %s123 = smul.addr %s122, 8
          %s124 = scalar_lea.vmem %s1, %s123
          %s125 = smul.u32 3, %s11
        $region24: #{tpu_custom_call.1} parent=15 // pred_fallthru
          _
      $region16: #{tpu_custom_call.1} parent=5 // pred_fallthru
        _
      %p126 = scmp.le.s32.totalorder 1, %s11
      %p127 = scmp.lt.s32.totalorder %s11, 4
      %p128 = pnand %p126, %p127
      %p129 = pneg %p128
      // Predicated region
      $region25: #{tpu_custom_call.1} parent=5 // pred_check
        _
      $region26: #{tpu_custom_call.1} parent=5 // pred_check_branch
        %131 = sbr.rel (%p128) target = $region28
      $region27: #{tpu_custom_call.1} parent=5 // pred_region
        %s132 = ssub.s32 %s11, 1
        %s133 = smul.u32 3, %s16
        %p134 = scmp.lt.s32.totalorder %s133, 8
        %s135 = scalar_select %p134, %s133, 8
        %s136 = smul.addr %s135, 8
        %s137 = scalar_lea.vmem %s0, %s136
        %p138 = pneg %p37
        %p139 = pneg %p34
        %s140 = smul.u32 3, %s16
        %p141 = scmp.lt.s32.totalorder %s140, 8
        %s142 = scalar_select %p141, %s140, 8
        %s143 = smul.addr %s142, 8
        %s144 = scalar_lea.vmem %s1, %s143
        %p145 = pneg %p63
        %p146 = pneg %p60
        %p147 = pneg %p89
        %p148 = pneg %p86
        %s149 = sand.u32 %s76, 1
        %s150 = scalar_lea.sflag [#allocation3], %s149
        %s151 = sand.u32 %s76, 1
        %s152 = scalar_lea.vmem [#allocation2], %s151
        %s153 = smul.u32 3, %s16
        %p154 = scmp.lt.s32.totalorder %s153, 8
        %s155 = scalar_select %p154, %s153, 8
        %s156 = smul.addr %s155, 8
        %s157 = scalar_lea.vmem %s0, %s156
        %s158 = smul.u32 3, %s16
        %s159 = smul.u32 3, %s16
        %p160 = scmp.lt.s32.totalorder %s159, 8
        %s161 = scalar_select %p160, %s159, 8
        %s162 = smul.addr %s161, 8
        %s163 = scalar_lea.vmem %s1, %s162
        %s164 = smul.u32 3, %s16
        %v165 = vld [vmem:[%s157] sm:$0xff]
        %v166 = vld [vmem:[%s157 + $0x8] sm:$0xff]
        %v167 = vld [vmem:[%s157 + $0x10] sm:$0xff]
        %v168 = vld [vmem:[%s163] sm:$0xff]
        %v169 = vld [vmem:[%s163 + $0x8] sm:$0xff]
        %v170 = vld [vmem:[%s163 + $0x10] sm:$0xff]
        %v171 = vlaneseq
        %v172 = vand.u32 %v171, 127
        %173 = vset.pattern.permute.xlu0 0
        %174 = vperm.xlu0 %173, %v168
        %v175 = vpop.permute.xlu0 %174
        %176 = vset.pattern.permute.xlu0 0
        %177 = vperm.xlu0 %176, %v169
        %v178 = vpop.permute.xlu0 %177
        %179 = vset.pattern.permute.xlu0 0
        %180 = vperm.xlu0 %179, %v170
        %v181 = vpop.permute.xlu0 %180
        %vm182 = vcmp.eq.s32.totalorder %v172, %v175
        %vm183 = vcmp.eq.s32.totalorder %v172, %v178
        %vm184 = vcmp.eq.s32.totalorder %v172, %v181
        %v185 = vsel %vm182, %v165, 0.0
        %v186 = vsel %vm183, %v166, 0.0
        %v187 = vsel %vm184, %v167, 0.0
        %vm188 = vcmask 261120
        %v189 = vsel %vm188, %v185, 0.0
        %190 = vadd.xlane.f32.xlu0 %v189
        %v191 = vpop.xlane.xlu0 %190
        %v192 = vsel %vm188, %v186, 0.0
        %193 = vadd.xlane.f32.xlu0 %v192
        %v194 = vpop.xlane.xlu0 %193
        %v195 = vsel %vm188, %v187, 0.0
        %196 = vadd.xlane.f32.xlu0 %v195
        %v197 = vpop.xlane.xlu0 %196
        %v198 = vsub.f32 1.0, %v191
        %v199 = vsub.f32 1.0, %v194
        %v200 = vsub.f32 1.0, %v197
        %v201 = vmul.f32 %v198, %v198
        %v202 = vmul.f32 %v199, %v199
        %v203 = vmul.f32 %v200, %v200
        %v204 = vlaneseq
        %v205 = vshrl.u32 %v204, 7
        %v206 = vadd.s32 %v205, 8
        %v207 = vadd.s32 %v205, 16
        %s208 = smul.u32 %s16, 24
        %s209 = ssub.s32 70, %s208
        %v210 = vstv %s209
        %vm211 = vcmp.lt.s32.totalorder %v205, %v210
        %vm212 = vcmp.lt.s32.totalorder %v206, %v210
        %vm213 = vcmp.lt.s32.totalorder %v207, %v210
        %v214 = vsel %vm211, %v201, 0.0
        %v215 = vsel %vm212, %v202, 0.0
        %v216 = vsel %vm213, %v203, 0.0
        %vm217 = vcmask 7168
        %v218 = vsel %vm217, %v214, 0.0
        %v219 = vsel %vm217, %v215, 0.0
        %v220 = vadd.f32 %v218, %v219
        %v221 = vsel %vm217, %v216, 0.0
        %v222 = vadd.f32 %v220, %v221
        %223 = vadd.xlane.f32.xlu0 %v222
        %v224 = vpop.xlane.xlu0 %223
        %v225 = vrot.slane %v224, 4
        %v226 = vadd.f32 %v224, %v225
        %v227 = vrot.slane %v226, 2
        %v228 = vadd.f32 %v226, %v227
        %v229 = vrot.slane %v228, 1
        %v230 = vadd.f32 %v228, %v229
        %s231 = vtos %v230
        %v232 = vstv %s231
        %233 = vst [vmem:[%s152] sm:$0x1] %v232
        %s234 = sand.u32 %s76, 1
        %s235 = scalar_lea.sflag [#allocation3], %s234
        %s236 = sand.u32 %s76, 1
        %s237 = scalar_lea.vmem [#allocation2], %s236
        // Predicated region
        $region29: #{tpu_custom_call.1} parent=27 // pred_check
          %p238 = pneg %p86
        $region30: #{tpu_custom_call.1} parent=27 // pred_check_branch
          %240 = sbr.rel (%p238) target = $region32
        $region31: #{tpu_custom_call.1} parent=27 // pred_region
          %s242 = ssub.s32 16, 16
          %243 = vsyncadd %s235, %s242
          %s244 = smul.addr %s16, 16
          %s245 = scalar_lea.hbm %s2, %s244
          %s247 = sshll.u32 %s237, 4
          %s248 = int_to_ptr.vmem [resolvable:$true] %s247
          %250 = dma.vmem_to_hbm [thread:$0]  %s248, 16, %s245, %s235
        $region32: #{tpu_custom_call.1} parent=27 // pred_fallthru
          _
      $region28: #{tpu_custom_call.1} parent=5 // pred_fallthru
        _
      %p251 = scmp.le.s32.totalorder 2, %s11
      // Predicated region
      $region33: #{tpu_custom_call.1} parent=5 // pred_check
        %p252 = pneg %p251
      $region34: #{tpu_custom_call.1} parent=5 // pred_check_branch
        %254 = sbr.rel (%p252) target = $region36
      $region35: #{tpu_custom_call.1} parent=5 // pred_region
        %s255 = ssub.s32 %s11, 2
        // Predicated region
        $region37: #{tpu_custom_call.1} parent=35 // pred_check
          %p256 = pneg %p92
        $region38: #{tpu_custom_call.1} parent=35 // pred_check_branch
          %258 = sbr.rel (%p256) target = $region40
        $region39: #{tpu_custom_call.1} parent=35 // pred_region
          %s259 = sand.u32 %s77, 1
          %s260 = scalar_lea.sflag [#allocation3], %s259
          %s261 = sand.u32 %s77, 1
          %s262 = scalar_lea.vmem [#allocation2], %s261
          %263 = dma.done %s260, 16
        $region40: #{tpu_custom_call.1} parent=35 // pred_fallthru
          _
      $region36: #{tpu_custom_call.1} parent=5 // pred_fallthru
        _
    $region6: #{tpu_custom_call.1} parent=1 // loop_footer
      %s15 = sadd.s32 1, %s11
    $region7: #{tpu_custom_call.1} parent=1 // loop_footer_branch
      %10 = sbr.rel target = $region3
    $region8: #{tpu_custom_call.1} parent=1 // loop_exit
      _
    %264 = vsyncpa [#allocation3], 1
    %s265 = scalar_lea.sflag [#allocation3], 1
    %266 = vsyncpa %s265, 1

</llo_original>
